<compile_context>
chip_gen: v7x
topology: tpu7x:2x2x1
jax: 0.10.0
libtpu: 0.0.40
codegen_flags: <defaults>
</compile_context>

<pallas_src>
import functools

import jax
import jax.numpy as jnp
from jax import lax
from jax.experimental import pallas as pl
from jax.experimental.pallas import tpu as pltpu

NUM_CLASSES = 5
LANE = 128          # class dim padded to a full lane width (dense MXU / unmasked vst)
MAX_TILE_B = 512    # rows per grid step; multiple of 8, far under VMEM budget


def _choose_tile_b(batch):
    b8 = ((batch + 7) // 8) * 8
    return min(MAX_TILE_B, b8)


# ---------------------------------------------------------------------------
# Kernels
# ---------------------------------------------------------------------------
def _linear_kernel(x_ref, w_ref, b_ref, o_ref, *, use_bf16):
    x = x_ref[...]                 # (tile_b, D)
    w = w_ref[...]                 # (LANE, D); rows >= NUM_CLASSES are zero padding
    if use_bf16:
        x = x.astype(jnp.bfloat16)
        w = w.astype(jnp.bfloat16)
    # x @ w.T without any wrapper transpose: contract last dims of both operands.
    logits = lax.dot_general(
        x, w,
        dimension_numbers=(((1,), (1,)), ((), ())),
        preferred_element_type=jnp.float32,
    )
    o_ref[...] = (logits + b_ref[...]).astype(o_ref.dtype)


def _linear_ce_kernel(x_ref, w_ref, b_ref, y_ref, psum_ref, *,
                      tile_b, num_classes, batch, use_bf16):
    i = pl.program_id(0)
    x = x_ref[...]
    w = w_ref[...]
    if use_bf16:
        x = x.astype(jnp.bfloat16)
        w = w.astype(jnp.bfloat16)
    logits = lax.dot_general(
        x, w,
        dimension_numbers=(((1,), (1,)), ((), ())),
        preferred_element_type=jnp.float32,
    ) + b_ref[...]                                           # (tile_b, LANE) f32

    col = lax.broadcasted_iota(jnp.int32, (tile_b, LANE), 1)
    # Padded class columns must not influence max / logsumexp.
    logits = jnp.where(col < num_classes, logits, jnp.float32(-1e30))

    m = jnp.max(logits, axis=-1, keepdims=True)              # (tile_b, 1)
    z = logits - m
    lse = jnp.log(jnp.sum(jnp.exp(z), axis=-1, keepdims=True))

    # Select-and-reduce of the target column (labels are always < num_classes,
    # so padded columns never match and contribute exactly 0).
    target_z = jnp.sum(jnp.where(col == y_ref[...], z, 0.0),
                       axis=-1, keepdims=True)               # (tile_b, 1)
    per_example = lse - target_z                             # (tile_b, 1)

    # Mask padded batch rows (from rounding B up to a whole number of tiles).
    row = i * tile_b + lax.broadcasted_iota(jnp.int32, (tile_b, 1), 0)
    per_example = jnp.where(row < batch, per_example, 0.0)

    psum = jnp.sum(per_example)
    # Lane-dense (1, 8, 128) tile write; wrapper reads element [i, 0, 0].
    psum_ref[...] = jnp.full(psum_ref.shape, psum, dtype=jnp.float32)


# ---------------------------------------------------------------------------
# Wrapper (mirror of TorchModel.forward)
# ---------------------------------------------------------------------------
def torch_model_forward(x, w, b, y=None, *, use_bf16=False):
    """x: (B, D) f32; w: (C, D) f32 (nn.Linear layout); b: (C,) f32;
    y: optional (B,) int class labels -> scalar mean cross-entropy loss."""
    B, D = x.shape
    C = w.shape[0]

    tile_b = _choose_tile_b(B)
    nb = pl.cdiv(B, tile_b)
    b_pad = nb * tile_b

    # Pad batch to a whole number of tiles; pad class dim to a full lane width.
    x_p = jnp.pad(x, ((0, b_pad - B), (0, 0))) if b_pad != B else x
    w_p = jnp.pad(w, ((0, LANE - C), (0, 0)))                # (LANE, D)
    bias_p = jnp.pad(b, (0, LANE - C)).reshape(1, LANE)      # (1, LANE)

    cparams = pltpu.CompilerParams(
        dimension_semantics=("parallel",),        # shard batch grid across TCs (v7x)
        vmem_limit_bytes=32 * 1024 * 1024,        # explicit budget, safe on v7x 64 MiB
    )

    if y is None:
        cost = pl.CostEstimate(
            flops=2 * b_pad * D * LANE,
            transcendentals=0,
            bytes_accessed=4 * (b_pad * D + LANE * D + LANE + b_pad * LANE),
        )
        out = pl.pallas_call(
            functools.partial(_linear_kernel, use_bf16=use_bf16),
            out_shape=jax.ShapeDtypeStruct((b_pad, LANE), jnp.float32),
            grid_spec=pltpu.PrefetchScalarGridSpec(
                num_scalar_prefetch=0,
                grid=(nb,),
                in_specs=[
                    pl.BlockSpec((tile_b, D), lambda i: (i, 0)),
                    pl.BlockSpec((LANE, D), lambda i: (0, 0)),
                    pl.BlockSpec((1, LANE), lambda i: (0, 0)),
                ],
                out_specs=pl.BlockSpec((tile_b, LANE), lambda i: (i, 0)),
            ),
            compiler_params=cparams,
            cost_estimate=cost,
        )(x_p, w_p, bias_p)
        return out[:B, :C]

    # Training path: fused linear + cross-entropy, per-block partial sums.
    y_p = y.astype(jnp.int32).reshape(B, 1)
    if b_pad != B:
        y_p = jnp.pad(y_p, ((0, b_pad - B), (0, 0)))

    cost = pl.CostEstimate(
        flops=2 * b_pad * D * LANE,
        transcendentals=b_pad * LANE,
        bytes_accessed=4 * (b_pad * D + LANE * D + LANE + b_pad + nb * 8 * LANE),
    )
    kern = functools.partial(_linear_ce_kernel, tile_b=tile_b, num_classes=C,
                             batch=B, use_bf16=use_bf16)
    partials = pl.pallas_call(
        kern,
        out_shape=jax.ShapeDtypeStruct((nb, 8, LANE), jnp.float32),
        grid_spec=pltpu.PrefetchScalarGridSpec(
            num_scalar_prefetch=0,
            grid=(nb,),
            in_specs=[
                pl.BlockSpec((tile_b, D), lambda i: (i, 0)),
                pl.BlockSpec((LANE, D), lambda i: (0, 0)),
                pl.BlockSpec((1, LANE), lambda i: (0, 0)),
                pl.BlockSpec((tile_b, 1), lambda i: (i, 0)),
            ],
            out_specs=pl.BlockSpec((1, 8, LANE), lambda i: (i, 0, 0)),
        ),
        compiler_params=cparams,
        cost_estimate=cost,
    )(x_p, w_p, bias_p, y_p)
    return jnp.sum(partials[:, 0, 0]) / B


# ---------------------------------------------------------------------------
# Main
# ---------------------------------------------------------------------------
if __name__ == "__main__":
    key = jax.random.PRNGKey(0)
    D, C = 32, NUM_CLASSES
    k_x, k_w, k_b, k_y, k_x2, k_y2 = jax.random.split(key, 6)

    bound = 1.0 / (D ** 0.5)
    w = jax.random.uniform(k_w, (C, D), minval=-bound, maxval=bound, dtype=jnp.float32)
    b = jax.random.uniform(k_b, (C,), minval=-bound, maxval=bound, dtype=jnp.float32)

    def ref_logits(x):
        return x @ w.T + b

    def ref_loss(x, y):
        lg = ref_logits(x)
        lse = jax.nn.logsumexp(lg, axis=-1)
        return jnp.mean(lse - lg[jnp.arange(x.shape[0]), y])

    # --- aligned batch ---
    B = 8
    x = jax.random.normal(k_x, (B, D), dtype=jnp.float32)
    y = jax.random.randint(k_y, (B,), 0, C, dtype=jnp.int32)

    y_pred = jax.block_until_ready(torch_model_forward(x, w, b))
    loss = jax.block_until_ready(torch_model_forward(x, w, b, y))
    assert jnp.allclose(y_pred, ref_logits(x), atol=1e-4), "logits mismatch"
    assert jnp.allclose(loss, ref_loss(x, y), atol=1e-4), "loss mismatch"

    # --- ragged batch (exercises tile padding + in-kernel row masking) ---
    B2 = 13
    x2 = jax.random.normal(k_x2, (B2, D), dtype=jnp.float32)
    y2 = jax.random.randint(k_y2, (B2,), 0, C, dtype=jnp.int32)

    y_pred2 = jax.block_until_ready(torch_model_forward(x2, w, b))
    loss2 = jax.block_until_ready(torch_model_forward(x2, w, b, y2))
    assert jnp.allclose(y_pred2, ref_logits(x2), atol=1e-4), "ragged logits mismatch"
    assert jnp.allclose(loss2, ref_loss(x2, y2), atol=1e-4), "ragged loss mismatch"

    print("KERNEL_OK")
</pallas_src>

<mosaic_0001>
module attributes {stable_mosaic.version = 11 : i64} {
  func.func @_linear_kernel(%arg0: i32, %arg1: memref<8x32xf32, #tpu.memory_space<vmem>>, %arg2: memref<128x32xf32, #tpu.memory_space<vmem>>, %arg3: memref<1x128xf32, #tpu.memory_space<vmem>>, %arg4: memref<8x128xf32, #tpu.memory_space<vmem>>) attributes {dimension_semantics = [#tpu.dimension_semantics<parallel>], iteration_bounds = array<i64: 1>, scalar_prefetch = 0 : i64, scratch_operands = 0 : i64, tpu.core_type = #tpu.core_type<tc>, window_params = [{transform_indices = @transform_0, window_bounds = array<i64: 8, 32>}, {pipeline_mode = #tpu.pipeline_mode<synchronous>, transform_indices = @transform_1, window_bounds = array<i64: 128, 32>}, {pipeline_mode = #tpu.pipeline_mode<synchronous>, transform_indices = @transform_2, window_bounds = array<i64: 1, 128>}, {transform_indices = @transform_3, window_bounds = array<i64: 8, 128>}]} {
    %c0 = arith.constant 0 : index
    %c0_0 = arith.constant 0 : index
    %0 = vector.load %arg1[%c0, %c0_0] : memref<8x32xf32, #tpu.memory_space<vmem>>, vector<8x32xf32>
    %c0_1 = arith.constant 0 : index
    %c0_2 = arith.constant 0 : index
    %1 = vector.load %arg2[%c0_1, %c0_2] : memref<128x32xf32, #tpu.memory_space<vmem>>, vector<128x32xf32>
    %cst = arith.constant dense<0.000000e+00> : vector<8x128xf32>
    %2 = tpu.matmul %0, %1, %cst {dimension_numbers = #tpu.dot_dimension_numbers<[1], [1], [0], [0], [0, 0, 1, 0], [], []>} : vector<8x32xf32>, vector<128x32xf32>, vector<8x128xf32> -> vector<8x128xf32>
    %c0_3 = arith.constant 0 : index
    %c0_4 = arith.constant 0 : index
    %3 = vector.load %arg3[%c0_3, %c0_4] : memref<1x128xf32, #tpu.memory_space<vmem>>, vector<1x128xf32>
    %4 = vector.broadcast %3 : vector<1x128xf32> to vector<8x128xf32>
    %5 = arith.addf %2, %4 : vector<8x128xf32>
    %c0_5 = arith.constant 0 : index
    %c0_6 = arith.constant 0 : index
    %6 = vector.load %arg4[%c0_5, %c0_6] : memref<8x128xf32, #tpu.memory_space<vmem>>, vector<8x128xf32>
    tpu.vector_store %arg4[%c0_5, %c0_6], %5 {strides = array<i32>} : memref<8x128xf32, #tpu.memory_space<vmem>>, vector<8x128xf32>,
    return
  }
  func.func @transform_0(%arg0: i32) -> (i32, i32) {
    %c0_i32 = arith.constant 0 : i32
    %c0_i32_0 = arith.constant 0 : i32
    return %arg0, %c0_i32 : i32, i32
  }
  func.func @transform_1(%arg0: i32) -> (i32, i32) {
    %c0_i32 = arith.constant 0 : i32
    %c0_i32_0 = arith.constant 0 : i32
    %c0_i32_1 = arith.constant 0 : i32
    return %c0_i32, %c0_i32_0 : i32, i32
  }
  func.func @transform_2(%arg0: i32) -> (i32, i32) {
    %c0_i32 = arith.constant 0 : i32
    %c0_i32_0 = arith.constant 0 : i32
    %c0_i32_1 = arith.constant 0 : i32
    return %c0_i32, %c0_i32_0 : i32, i32
  }
  func.func @transform_3(%arg0: i32) -> (i32, i32) {
    %c0_i32 = arith.constant 0 : i32
    %c0_i32_0 = arith.constant 0 : i32
    return %arg0, %c0_i32 : i32, i32
  }
}

</mosaic_0001>

<llo_original>
// kernel: tpu_custom_call.1
$region0: #{tpu_custom_call.1}
  #allocation0 [shape = 'u32[]', space=smem, size = 0x4, offset = 0x4, fixed_abs, tag = 'smem constant byte address 0x4 - core index']
  #allocation1 [shape = 'u32[144,128]{1,0:T(1,128)}', space=vmem, size = 0x12000, scoped, tag = 'internal scratch']
  %s0 = inlined_call_operand.vmem [shape: f32[8,32], index: 0, kind: input, shape index: {}]
  %s1 = inlined_call_operand.vmem [shape: f32[128,32], index: 1, kind: input, shape index: {}]
  %s2 = inlined_call_operand.vmem [shape: f32[1,128], index: 2, kind: input, shape index: {}]
  %s3 = inlined_call_operand.hbm [shape: f32[8,128], index: 3, kind: output, shape index: {}]
  %s4 = sld [smem:[#allocation0]]
  $region22: #{tpu_custom_call.1} parent=0
    _
  %s6 = ssub.s32 1, %s4
  %s7 = scalar_select 0, %s6, %s4
  $region1: #{tpu_custom_call.1} parent=0
    #allocation2 [shape = 'u8[4096]{0}', space=vmem, size = 0x1000, scoped, tag = 'output window, operand 0, single buffered']
    #allocation3 [shape = 's32[1]{0}', space=sflag, size = 0x4, scoped, tag = 'scoped memory for tpu_custom_call.1']
    %8 = vsyncpa [#allocation3], 0
    // Predicated region
    $region2: #{tpu_custom_call.1} parent=1 // pred_check
      _
    $region3: #{tpu_custom_call.1} parent=1 // pred_check_branch
      %10 = sbr.rel (0) target = $region5
    $region4: #{tpu_custom_call.1} parent=1 // pred_region
      _
    $region5: #{tpu_custom_call.1} parent=1 // pred_fallthru
      _
    // Predicated region
    $region6: #{tpu_custom_call.1} parent=1 // pred_check
      _
    $region7: #{tpu_custom_call.1} parent=1 // pred_check_branch
      %12 = sbr.rel (0) target = $region9
    $region8: #{tpu_custom_call.1} parent=1 // pred_region
      _
    $region9: #{tpu_custom_call.1} parent=1 // pred_fallthru
      _
    // Predicated region
    $region10: #{tpu_custom_call.1} parent=1 // pred_check
      _
    $region11: #{tpu_custom_call.1} parent=1 // pred_check_branch
      %14 = sbr.rel (0) target = $region13
    $region12: #{tpu_custom_call.1} parent=1 // pred_region
      _
    $region13: #{tpu_custom_call.1} parent=1 // pred_fallthru
      _
    %v15 = vld [vmem:[%s0] sm:$0xff]
    %v16 = vld [vmem:[%s1] sm:$0xff]
    %v17 = vld [vmem:[%s1 + $0x8] sm:$0xff]
    %v18 = vld [vmem:[%s1 + $0x10] sm:$0xff]
    %v19 = vld [vmem:[%s1 + $0x18] sm:$0xff]
    %v20 = vld [vmem:[%s1 + $0x20] sm:$0xff]
    %v21 = vld [vmem:[%s1 + $0x28] sm:$0xff]
    %v22 = vld [vmem:[%s1 + $0x30] sm:$0xff]
    %v23 = vld [vmem:[%s1 + $0x38] sm:$0xff]
    %v24 = vld [vmem:[%s1 + $0x40] sm:$0xff]
    %v25 = vld [vmem:[%s1 + $0x48] sm:$0xff]
    %v26 = vld [vmem:[%s1 + $0x50] sm:$0xff]
    %v27 = vld [vmem:[%s1 + $0x58] sm:$0xff]
    %v28 = vld [vmem:[%s1 + $0x60] sm:$0xff]
    %v29 = vld [vmem:[%s1 + $0x68] sm:$0xff]
    %v30 = vld [vmem:[%s1 + $0x70] sm:$0xff]
    %v31 = vld [vmem:[%s1 + $0x78] sm:$0xff]
    %v32 = vld [vmem:[%s2] sm:$0x1]
    %v34 = vlaneseq
    %v35 = vshrl.u32 %v34, 7
    %v36 = vsub.s32 0, %v35
    %v37 = vrot.slane %v32, %v36
    %vm39 = vcmask 261120
    %v41 = vsel %vm39, %v15, 0
    %v44 = vsel %vm39, %v16, 0
    %v47 = vsel %vm39, %v17, 0
    %v50 = vsel %vm39, %v18, 0
    %v53 = vsel %vm39, %v19, 0
    %v56 = vsel %vm39, %v20, 0
    %v59 = vsel %vm39, %v21, 0
    %v62 = vsel %vm39, %v22, 0
    %v65 = vsel %vm39, %v23, 0
    %v68 = vsel %vm39, %v24, 0
    %v71 = vsel %vm39, %v25, 0
    %v74 = vsel %vm39, %v26, 0
    %v77 = vsel %vm39, %v27, 0
    %v80 = vsel %vm39, %v28, 0
    %v83 = vsel %vm39, %v29, 0
    %v86 = vsel %vm39, %v30, 0
    %v89 = vsel %vm39, %v31, 0
    %91 = vmatprep.subr.mxu0 0.0
    %92 = vmatpush1.xpose.msra.mxu0 %v44
    %93 = vmatprep.subr.mxu0 0.0
    %94 = vmatpush1.xpose.msra.mxu0 %v47
    %95 = vmatprep.subr.mxu0 0.0
    %96 = vmatpush1.xpose.msra.mxu0 %v50
    %97 = vmatprep.subr.mxu0 0.0
    %98 = vmatpush1.xpose.msra.mxu0 %v53
    %99 = vmatprep.subr.mxu0 0.0
    %100 = vmatpush1.xpose.msra.mxu0 %v56
    %101 = vmatprep.subr.mxu0 0.0
    %102 = vmatpush1.xpose.msra.mxu0 %v59
    %103 = vmatprep.subr.mxu0 0.0
    %104 = vmatpush1.xpose.msra.mxu0 %v62
    %105 = vmatprep.subr.mxu0 0.0
    %106 = vmatpush1.xpose.msra.mxu0 %v65
    %107 = vmatprep.subr.mxu0 0.0
    %108 = vmatpush1.xpose.msra.mxu0 %v68
    %109 = vmatprep.subr.mxu0 0.0
    %110 = vmatpush1.xpose.msra.mxu0 %v71
    %111 = vmatprep.subr.mxu0 0.0
    %112 = vmatpush1.xpose.msra.mxu0 %v74
    %113 = vmatprep.subr.mxu0 0.0
    %114 = vmatpush1.xpose.msra.mxu0 %v77
    %115 = vmatprep.subr.mxu0 0.0
    %116 = vmatpush1.xpose.msra.mxu0 %v80
    %117 = vmatprep.subr.mxu0 0.0
    %118 = vmatpush1.xpose.msra.mxu0 %v83
    %119 = vmatprep.subr.mxu0 0.0
    %120 = vmatpush1.xpose.msra.mxu0 %v86
    %121 = vmatprep.subr.mxu0 0.0
    %122 = vmatpush1.xpose.msra.mxu0 %v89
    %123 = vmatprep.subr.mxu0 0.0
    %124 = vmatpush1.xpose.msra.mxu0 0.0
    %125 = vmatprep.subr.mxu0 0.0
    %126 = vmatpush1.xpose.msra.mxu0 0.0
    %127 = vmatprep.subr.mxu0 0.0
    %128 = vmatpush1.xpose.msra.mxu0 0.0
    %129 = vmatprep.subr.mxu0 0.0
    %130 = vmatpush1.xpose.msra.mxu0 0.0
    %131 = vmatprep.subr.mxu0 0.0
    %132 = vmatpush1.xpose.msra.mxu0 0.0
    %133 = vmatprep.subr.mxu0 0.0
    %134 = vmatpush1.xpose.msra.mxu0 0.0
    %135 = vmatprep.subr.mxu0 0.0
    %136 = vmatpush1.xpose.msra.mxu0 0.0
    %137 = vmatprep.subr.mxu0 0.0
    %138 = vmatpush1.xpose.msra.mxu0 0.0
    %139 = vmatprep.subr.mxu0 0.0
    %140 = vmatpush1.xpose.msra.mxu0 0.0
    %141 = vmatprep.subr.mxu0 0.0
    %142 = vmatpush1.xpose.msra.mxu0 0.0
    %143 = vmatprep.subr.mxu0 0.0
    %144 = vmatpush1.xpose.msra.mxu0 0.0
    %145 = vmatprep.subr.mxu0 0.0
    %146 = vmatpush1.xpose.msra.mxu0 0.0
    %147 = vmatprep.subr.mxu0 0.0
    %148 = vmatpush1.xpose.msra.mxu0 0.0
    %149 = vmatprep.subr.mxu0 0.0
    %150 = vmatpush1.xpose.msra.mxu0 0.0
    %151 = vmatprep.subr.mxu0 0.0
    %152 = vmatpush1.xpose.msra.mxu0 0.0
    %153 = vmatprep.subr.mxu0 0.0
    %154 = vmatpush1.xpose.msra.mxu0 0.0
    %155 = vmatprep.mubr.f32.mxu0 0.0
    %156 = vmatmul.mubr.f32.gmra.mrb[0].mxu0 %v41
    %v157 = vpop.f32.mrb[0].mxu0
    %v158 = vadd.f32 %v37, %v157
    %v159 = vpop.f32.mrb[0].mxu0
    %160 = vdwg.mxu0
    %161 = vst [vmem:[#allocation2] sm:$0xff] %v158
    // Predicated region
    $region14: #{tpu_custom_call.1} parent=1 // pred_check
      _
    $region15: #{tpu_custom_call.1} parent=1 // pred_check_branch
      %163 = sbr.rel (0) target = $region17
    $region16: #{tpu_custom_call.1} parent=1 // pred_region
      %s165 = ssub.s32 128, 128
      %166 = vsyncadd [#allocation3], %s165
      %s168 = sshll.u32 [#allocation2], 4
      %s169 = int_to_ptr.vmem [resolvable:$true] %s168
      %171 = dma.vmem_to_hbm [thread:$0]  %s169, 128, %s3, [#allocation3]
    $region17: #{tpu_custom_call.1} parent=1 // pred_fallthru
      _
    // Predicated region
    $region18: #{tpu_custom_call.1} parent=1 // pred_check
      _
    $region19: #{tpu_custom_call.1} parent=1 // pred_check_branch
      %173 = sbr.rel (0) target = $region21
    $region20: #{tpu_custom_call.1} parent=1 // pred_region
      %174 = dma.done [#allocation3], 128
    $region21: #{tpu_custom_call.1} parent=1 // pred_fallthru
      _
    %175 = vsyncpa [#allocation3], 1

</llo_original>
